<compile_context>
chip_gen: v7x
topology: tpu7x:2x2x1
jax: 0.10.0
libtpu: 0.0.40
codegen_flags: <defaults>
</compile_context>

<pallas_src>
import functools

import jax
import jax.numpy as jnp
from jax.experimental import pallas as pl
from jax.experimental.pallas import tpu as pltpu


# ---------------------------------------------------------------------------
# Tile selection helper
# ---------------------------------------------------------------------------
def _pick_tile(dim_size, target, *, min_steps=1, itemsize=4):
    """Largest tile <= target that divides dim_size and is a multiple of the sublane
    granule (8 rows for 4-byte dtypes, 16 for 2-byte, 32 for 1-byte).  min_steps > 1 keeps at
    least that many grid steps so a 'parallel' axis can be split across v7x's two TensorCores."""
    g = max(8, 32 // max(1, itemsize))
    if dim_size <= g:
        return dim_size
    t = min(target, dim_size)
    if min_steps > 1 and dim_size >= g * min_steps:
        t = min(t, dim_size // min_steps)
    t = max(g, (t // g) * g)
    while t > g and dim_size % t != 0:
        t -= g
    if dim_size % t != 0:
        # TODO(synk): falls back to the full dimension when no divisor exists; for very long
        # odd sequence lengths this can blow VMEM — ragged/masked blocks would be needed.
        t = dim_size
    return t


# ---------------------------------------------------------------------------
# Token-tiled linear projection kernels (to_qkv has no bias, to_out has bias)
# ---------------------------------------------------------------------------
def _linear_nobias_kernel(x_ref, w_ref, o_ref):
    # (tm, K) @ (K, N) on the MXU with f32 accumulation; cast on store.
    o_ref[...] = jnp.dot(x_ref[...], w_ref[...],
                         preferred_element_type=jnp.float32).astype(o_ref.dtype)


def _linear_bias_kernel(x_ref, w_ref, b_ref, o_ref):
    acc = jnp.dot(x_ref[...], w_ref[...], preferred_element_type=jnp.float32)
    o_ref[...] = (acc + b_ref[...].astype(jnp.float32)).astype(o_ref.dtype)


def _linear(x2d, w_t, b=None, *, tm_target=256):
    """x2d: (M, K); w_t: (K, N) pre-transposed (in, out) layout; b: (N,) or None."""
    M, K = x2d.shape
    N = w_t.shape[1]
    itemsize = x2d.dtype.itemsize
    tm = _pick_tile(M, tm_target, min_steps=2, itemsize=itemsize)

    in_specs = [pl.BlockSpec((tm, K), lambda i: (i, 0)),
                pl.BlockSpec((K, N), lambda i: (0, 0))]   # weight resident (small for attn proj)
    operands = [x2d, w_t]
    kernel = _linear_nobias_kernel
    bias_bytes = 0
    if b is not None:
        in_specs.append(pl.BlockSpec((1, N), lambda i: (0, 0)))
        operands.append(b.reshape(1, N))
        kernel = _linear_bias_kernel
        bias_bytes = N * itemsize

    cost = pl.CostEstimate(
        flops=2 * M * K * N,
        transcendentals=0,
        bytes_accessed=(M * K + K * N + M * N) * itemsize + bias_bytes,
    )
    return pl.pallas_call(
        kernel,
        out_shape=jax.ShapeDtypeStruct((M, N), x2d.dtype),
        grid_spec=pltpu.PrefetchScalarGridSpec(
            num_scalar_prefetch=0,
            grid=(M // tm,),
            in_specs=in_specs,
            out_specs=pl.BlockSpec((tm, N), lambda i: (i, 0)),
        ),
        compiler_params=pltpu.CompilerParams(
            dimension_semantics=("parallel",),
            vmem_limit_bytes=32 * 1024 * 1024,
        ),
        cost_estimate=cost,
    )(*operands)


# ---------------------------------------------------------------------------
# Flash-attention style core: softmax(q k^T * scale) v with online softmax.
# Reads q/k/v directly from the (batch, seq, 3, heads, dim_head) qkv buffer via index_maps
# (no XLA split/transposes); writes a lane-dense (batch, seq, heads*dim_head) output.
# ---------------------------------------------------------------------------
def _flash_attn_kernel(q_ref, k_ref, v_ref, o_ref, m_sc, l_sc, acc_sc,
                       *, scale, heads, dim_head):
    ki = pl.program_id(2)

    @pl.when(ki == 0)
    def _():
        m_sc[...] = jnp.full(m_sc.shape, -jnp.inf, dtype=m_sc.dtype)
        l_sc[...] = jnp.zeros(l_sc.shape, dtype=l_sc.dtype)
        acc_sc[...] = jnp.zeros(acc_sc.shape, dtype=acc_sc.dtype)

    # q_ref/k_ref/v_ref: (tq|tk, heads, dim_head).  Per-head 2-D matmuls keep the MXU
    # contractions plain (no batched dot_general relayouts); heads is small (4-8).
    for h in range(heads):
        q_h = q_ref[:, h, :] * scale            # fold scale into q (tq x d), not the score tile
        k_h = k_ref[:, h, :]
        v_h = v_ref[:, h, :]

        # (tq, d) x (tk, d) -> (tq, tk) scores in f32 on the MXU (contract last dims, no .T).
        s = jax.lax.dot_general(q_h, k_h, (((1,), (1,)), ((), ())),
                                preferred_element_type=jnp.float32)

        m_prev = m_sc[h]                                          # (tq, 1)
        m_new = jnp.maximum(m_prev, s.max(axis=-1, keepdims=True))
        alpha = jnp.exp(m_prev - m_new)                           # (tq, 1)
        p = jnp.exp(s - m_new)                                    # (tq, tk)

        l_sc[h] = alpha * l_sc[h] + p.sum(axis=-1, keepdims=True)
        acc_sc[h] = alpha * acc_sc[h] + jax.lax.dot_general(
            p.astype(v_h.dtype), v_h, (((1,), (0,)), ((), ())),
            preferred_element_type=jnp.float32)
        m_sc[h] = m_new

    @pl.when(ki == pl.num_programs(2) - 1)
    def _():
        # Normalize with an EUP approximate reciprocal; store all heads into the lane-dense
        # (tq, heads*dim_head) output block (epilogue-only work, once per q tile).
        for h in range(heads):
            inv_l = pl.reciprocal(l_sc[h], approx=True)           # (tq, 1)
            o_ref[:, h * dim_head:(h + 1) * dim_head] = (
                acc_sc[h] * inv_l).astype(o_ref.dtype)


def _flash_attention(qkv5, scale, *, tq_target=128, tk_target=256):
    """qkv5: (batch, seq, 3, heads, dim_head) — free reshape of the to_qkv output.
    Returns (batch, seq, heads*dim_head)."""
    batch, seq, three, heads, d = qkv5.shape
    assert three == 3
    inner = heads * d
    itemsize = qkv5.dtype.itemsize
    tq = _pick_tile(seq, tq_target, itemsize=itemsize)
    tk = _pick_tile(seq, tk_target, itemsize=itemsize)
    n_q = seq // tq

    cost = pl.CostEstimate(
        flops=4 * batch * heads * seq * seq * d,            # q@k^T and p@v
        transcendentals=batch * heads * seq * seq,          # exp
        bytes_accessed=batch * heads * seq * d * (2 * n_q + 2) * itemsize,  # K/V re-read per q tile
    )
    kernel = functools.partial(_flash_attn_kernel, scale=scale, heads=heads, dim_head=d)
    return pl.pallas_call(
        kernel,
        out_shape=jax.ShapeDtypeStruct((batch, seq, inner), qkv5.dtype),
        grid_spec=pltpu.PrefetchScalarGridSpec(
            num_scalar_prefetch=0,
            grid=(batch, n_q, seq // tk),
            in_specs=[
                # q / k / v selected from the fused qkv buffer via the '3' axis index.
                pl.BlockSpec((None, tq, None, heads, d), lambda b, qi, ki: (b, qi, 0, 0, 0)),
                pl.BlockSpec((None, tk, None, heads, d), lambda b, qi, ki: (b, ki, 1, 0, 0)),
                pl.BlockSpec((None, tk, None, heads, d), lambda b, qi, ki: (b, ki, 2, 0, 0)),
            ],
            out_specs=pl.BlockSpec((None, tq, inner), lambda b, qi, ki: (b, qi, 0)),
            scratch_shapes=[
                pltpu.VMEM((heads, tq, 1), jnp.float32),   # running max
                pltpu.VMEM((heads, tq, 1), jnp.float32),   # running denom
                pltpu.VMEM((heads, tq, d), jnp.float32),   # f32 output accumulator
            ],
        ),
        compiler_params=pltpu.CompilerParams(
            dimension_semantics=("parallel", "parallel", "arbitrary"),
            vmem_limit_bytes=32 * 1024 * 1024,
        ),
        cost_estimate=cost,
    )(qkv5, qkv5, qkv5)


# ---------------------------------------------------------------------------
# Full Attention forward (mask=None path; Dropout(p=0.0) is the identity)
# ---------------------------------------------------------------------------
def attention_forward(x, w_qkv_t, w_out_t, b_out, *, heads, dim_head):
    """x: (batch, seq, dim).
    w_qkv_t: (dim, 3*heads*dim_head) — to_qkv weight, pre-transposed to (in, out).
    w_out_t: (heads*dim_head, dim)   — to_out weight, pre-transposed to (in, out).
    b_out:   (dim,)                  — to_out bias."""
    batch, seq, dim = x.shape
    inner = heads * dim_head
    scale = float(dim_head) ** -0.5
    M = batch * seq

    x2d = x.reshape(M, dim)

    # to_qkv: Linear(dim, 3*inner, bias=False).
    qkv = _linear(x2d, w_qkv_t)                                     # (M, 3*inner)

    # Free view matching torch's chunk(3) + 'b n (h d)' layout: (batch, seq, 3, heads, d).
    qkv5 = qkv.reshape(batch, seq, 3, heads, dim_head)

    # TODO(synk): optional boolean attention mask (masked_fill(mask == 0, -1e9)) not implemented;
    # this covers the forward(x, mask=None) path.
    o = _flash_attention(qkv5, scale)                               # (batch, seq, inner)

    # 'b h n d -> b n (h d)' already produced by the kernel; reshape below is a free view.
    out2d = _linear(o.reshape(M, inner), w_out_t, b_out)            # to_out + Dropout(0) identity
    return out2d.reshape(batch, seq, dim)


# ---------------------------------------------------------------------------
# Pure-JAX reference (matches the PyTorch module with mask=None, dropout p=0)
# ---------------------------------------------------------------------------
def _reference(x, w_qkv, w_out, b_out, heads, dim_head):
    batch, seq, dim = x.shape
    inner = heads * dim_head
    qkv = x @ w_qkv.T
    q, k, v = jnp.split(qkv, 3, axis=-1)

    def split_heads(t):
        return t.reshape(batch, seq, heads, dim_head).transpose(0, 2, 1, 3)

    q, k, v = map(split_heads, (q, k, v))
    dots = jnp.einsum('bhid,bhjd->bhij', q, k) * (float(dim_head) ** -0.5)
    attn = jax.nn.softmax(dots, axis=-1)
    out = jnp.einsum('bhij,bhjd->bhid', attn, v)
    out = out.transpose(0, 2, 1, 3).reshape(batch, seq, inner)
    return out @ w_out.T + b_out


if __name__ == "__main__":
    # Small shapes consistent with the module: dim=128, heads=4, dim_head=32 (inner_dim=128).
    batch, seq, dim = 2, 64, 128
    heads, dim_head = 4, 32
    inner = heads * dim_head

    key = jax.random.PRNGKey(0)
    kx, kqkv, kwo, kbo = jax.random.split(key, 4)
    x = jax.random.normal(kx, (batch, seq, dim), dtype=jnp.float32)
    # PyTorch Linear layouts: weight (out_features, in_features), bias (out_features,).
    w_qkv = jax.random.normal(kqkv, (3 * inner, dim), dtype=jnp.float32) * 0.05
    w_out = jax.random.normal(kwo, (dim, inner), dtype=jnp.float32) * 0.05
    b_out = jax.random.normal(kbo, (dim,), dtype=jnp.float32) * 0.05

    # One-time parameter layout prep (NOT per forward call): (in, out) copies for the kernels.
    w_qkv_t = jnp.asarray(w_qkv.T)   # (dim, 3*inner)
    w_out_t = jnp.asarray(w_out.T)   # (inner, dim)

    out = attention_forward(x, w_qkv_t, w_out_t, b_out, heads=heads, dim_head=dim_head)
    out = jax.block_until_ready(out)

    ref = _reference(x, w_qkv, w_out, b_out, heads, dim_head)
    assert out.shape == (batch, seq, dim)
    err = float(jnp.max(jnp.abs(out - ref)))
    assert jnp.allclose(out, ref, atol=2e-3, rtol=2e-3), err

    print("KERNEL_OK")
</pallas_src>

<mosaic_0001>
module attributes {stable_mosaic.version = 11 : i64} {
  func.func @_linear_nobias_kernel(%arg0: i32, %arg1: memref<64x128xf32, #tpu.memory_space<vmem>>, %arg2: memref<128x384xf32, #tpu.memory_space<vmem>>, %arg3: memref<64x384xf32, #tpu.memory_space<vmem>>) attributes {dimension_semantics = [#tpu.dimension_semantics<parallel>], iteration_bounds = array<i64: 2>, scalar_prefetch = 0 : i64, scratch_operands = 0 : i64, tpu.core_type = #tpu.core_type<tc>, window_params = [{transform_indices = @transform_0, window_bounds = array<i64: 64, 128>}, {pipeline_mode = #tpu.pipeline_mode<synchronous>, transform_indices = @transform_1, window_bounds = array<i64: 128, 384>}, {transform_indices = @transform_2, window_bounds = array<i64: 64, 384>}]} {
    %c0 = arith.constant 0 : index
    %c0_0 = arith.constant 0 : index
    %0 = vector.load %arg1[%c0, %c0_0] : memref<64x128xf32, #tpu.memory_space<vmem>>, vector<64x128xf32>
    %c0_1 = arith.constant 0 : index
    %c0_2 = arith.constant 0 : index
    %1 = vector.load %arg2[%c0_1, %c0_2] : memref<128x384xf32, #tpu.memory_space<vmem>>, vector<128x384xf32>
    %cst = arith.constant dense<0.000000e+00> : vector<64x384xf32>
    %2 = tpu.matmul %0, %1, %cst {dimension_numbers = #tpu.dot_dimension_numbers<[1], [0], [0], [1], [0, 0, 1, 1], [], []>} : vector<64x128xf32>, vector<128x384xf32>, vector<64x384xf32> -> vector<64x384xf32>
    %c0_3 = arith.constant 0 : index
    %c0_4 = arith.constant 0 : index
    %3 = vector.load %arg3[%c0_3, %c0_4] : memref<64x384xf32, #tpu.memory_space<vmem>>, vector<64x384xf32>
    tpu.vector_store %arg3[%c0_3, %c0_4], %2 {strides = array<i32>} : memref<64x384xf32, #tpu.memory_space<vmem>>, vector<64x384xf32>,
    return
  }
  func.func @transform_0(%arg0: i32) -> (i32, i32) {
    %c0_i32 = arith.constant 0 : i32
    %c0_i32_0 = arith.constant 0 : i32
    return %arg0, %c0_i32 : i32, i32
  }
  func.func @transform_1(%arg0: i32) -> (i32, i32) {
    %c0_i32 = arith.constant 0 : i32
    %c0_i32_0 = arith.constant 0 : i32
    %c0_i32_1 = arith.constant 0 : i32
    return %c0_i32, %c0_i32_0 : i32, i32
  }
  func.func @transform_2(%arg0: i32) -> (i32, i32) {
    %c0_i32 = arith.constant 0 : i32
    %c0_i32_0 = arith.constant 0 : i32
    return %arg0, %c0_i32 : i32, i32
  }
}

</mosaic_0001>

<llo_original>
// kernel: tpu_custom_call.1
$region0: #{tpu_custom_call.1}
  #allocation0 [shape = 'u32[]', space=smem, size = 0x4, offset = 0x4, fixed_abs, tag = 'smem constant byte address 0x4 - core index']
  #allocation1 [shape = 'u32[144,128]{1,0:T(1,128)}', space=vmem, size = 0x12000, scoped, tag = 'internal scratch']
  %s0 = inlined_call_operand.hbm [shape: f32[128,128], index: 0, kind: input, shape index: {}]
  %s1 = inlined_call_operand.hbm [shape: f32[128,384], index: 1, kind: input, shape index: {}]
  %s2 = inlined_call_operand.hbm [shape: f32[128,384], index: 2, kind: output, shape index: {}]
  %s3 = sld [smem:[#allocation0]]
  $region49: #{tpu_custom_call.1} parent=0
    _
  %s5 = ssub.s32 1, %s3
  %s6 = scalar_select 0, %s5, %s3
  $region1: #{tpu_custom_call.1} parent=0
    #allocation2 [shape = 'u8[65536]{0}', space=vmem, size = 0x10000, scoped, tag = 'input window, operand 0']
    #allocation3 [shape = 's32[2]{0}', space=sflag, size = 0x8, scoped, tag = 'scoped memory for tpu_custom_call.1']
    #allocation4 [shape = 's32[2]{0}', space=sflag, size = 0x8, scoped, tag = 'scoped memory for tpu_custom_call.1']
    #allocation5 [shape = 'u8[196608]{0}', space=vmem, size = 0x30000, scoped, tag = 'input window, operand 1, single buffered']
    #allocation6 [shape = 's32[1]{0}', space=sflag, size = 0x4, scoped, tag = 'scoped memory for tpu_custom_call.1']
    #allocation7 [shape = 'u8[196608]{0}', space=vmem, size = 0x30000, scoped, tag = 'output window, operand 0']
    %7 = vsyncpa [#allocation3], 0
    %s8 = scalar_lea.sflag [#allocation3], 1
    %9 = vsyncpa %s8, 0
    %10 = vsyncpa [#allocation6], 0
    %11 = vsyncpa [#allocation4], 0
    %s12 = scalar_lea.sflag [#allocation4], 1
    %13 = vsyncpa %s12, 0
    loop: start=0, step=1, limit=4
    $region2: #{tpu_custom_call.1} parent=1 // loop_pre_header
      _
    $region3: #{tpu_custom_call.1} parent=1 // loop_header
      %s15 = sphi 0, %s19
      %p16 = scmp.ge.s32.totalorder %s15, 4
      %s25 = sphi 0, %s27
      %s28 = sphi 0, %s25
      %s29 = sphi 0, %s28
      %s45 = sphi 0, %s29
      %s49 = sphi 0, %s49
      %s51 = sphi 0, %s49
      %s52 = sphi 0, %s51
      %s66 = sphi 0, %s52
      %s72 = sphi 0, %s74
      %s75 = sphi 0, %s72
      %s76 = sphi 0, %s75
      %s92 = sphi 0, %s76
    $region4: #{tpu_custom_call.1} parent=1 // loop_header_branch
      %18 = sbr.rel (%p16) target = $region8
    $region5: #{tpu_custom_call.1} parent=1 // loop_body
      %s20 = ssub.s32 %s15, 1
      %s21 = ssub.s32 %s15, 2
      %s22 = sadd.s32 %s15, 1
      %s23 = ssub.s32 %s15, %s22
      %p24 = scmp.eq.s32.totalorder %s23, 0
      %s26 = sadd.s32 %s25, 1
      %s27 = scalar_select %p24, %s25, %s26
      %p30 = pneg %p24
      %p31 = scmp.eq.s32.totalorder %s15, 1
      %p32 = por %p30, %p31
      %p33 = scmp.ne.s32.totalorder %s25, %s28
      %p34 = scmp.eq.s32.totalorder %s15, 0
      %p35 = por %p33, %p34
      %p36 = scmp.ne.s32.totalorder %s25, %s28
      %p37 = scmp.eq.s32.totalorder %s20, 1
      %p38 = por %p36, %p37
      %p39 = scmp.ne.s32.totalorder %s28, %s29
      %p40 = scmp.eq.s32.totalorder %s20, 0
      %p41 = por %p39, %p40
      %p42 = scmp.ne.s32.totalorder %s28, %s29
      %p43 = scmp.eq.s32.totalorder %s21, 1
      %p44 = por %p42, %p43
      %p46 = scmp.ne.s32.totalorder %s29, %s45
      %p47 = scmp.eq.s32.totalorder %s21, 0
      %p48 = por %p46, %p47
      %s50 = sadd.s32 %s49, 1
      %p53 = scmp.eq.s32.totalorder %s15, 1
      %p54 = scmp.ne.s32.totalorder %s49, %s51
      %p55 = scmp.eq.s32.totalorder %s15, 0
      %p56 = por %p54, %p55
      %p57 = scmp.ne.s32.totalorder %s49, %s51
      %p58 = scmp.eq.s32.totalorder %s20, 1
      %p59 = por %p57, %p58
      %p60 = scmp.ne.s32.totalorder %s51, %s52
      %p61 = scmp.eq.s32.totalorder %s20, 0
      %p62 = por %p60, %p61
      %p63 = scmp.ne.s32.totalorder %s51, %s52
      %p64 = scmp.eq.s32.totalorder %s21, 1
      %p65 = por %p63, %p64
      %p67 = scmp.ne.s32.totalorder %s52, %s66
      %p68 = scmp.eq.s32.totalorder %s21, 0
      %p69 = por %p67, %p68
      %s70 = ssub.s32 %s15, %s22
      %p71 = scmp.eq.s32.totalorder %s70, 0
      %s73 = sadd.s32 %s72, 1
      %s74 = scalar_select %p71, %s72, %s73
      %p77 = pneg %p71
      %p78 = scmp.eq.s32.totalorder %s15, 1
      %p79 = por %p77, %p78
      %p80 = scmp.ne.s32.totalorder %s72, %s75
      %p81 = scmp.eq.s32.totalorder %s15, 0
      %p82 = por %p80, %p81
      %p83 = scmp.ne.s32.totalorder %s72, %s75
      %p84 = scmp.eq.s32.totalorder %s20, 1
      %p85 = por %p83, %p84
      %p86 = scmp.ne.s32.totalorder %s75, %s76
      %p87 = scmp.eq.s32.totalorder %s20, 0
      %p88 = por %p86, %p87
      %p89 = scmp.ne.s32.totalorder %s75, %s76
      %p90 = scmp.eq.s32.totalorder %s21, 1
      %p91 = por %p89, %p90
      %p93 = scmp.ne.s32.totalorder %s76, %s92
      %p94 = scmp.eq.s32.totalorder %s21, 0
      %p95 = por %p93, %p94
      %p96 = scmp.le.s32.totalorder 1, %s15
      %p97 = scmp.lt.s32.totalorder %s15, 3
      %p98 = pnand %p96, %p97
      %p99 = pneg %p98
      // Predicated region
      $region9: #{tpu_custom_call.1} parent=5 // pred_check
        _
      $region10: #{tpu_custom_call.1} parent=5 // pred_check_branch
        %101 = sbr.rel (%p98) target = $region12
      $region11: #{tpu_custom_call.1} parent=5 // pred_region
        %s102 = ssub.s32 %s15, 1
        // Predicated region
        $region13: #{tpu_custom_call.1} parent=11 // pred_check
          %p103 = pneg %p62
        $region14: #{tpu_custom_call.1} parent=11 // pred_check_branch
          %105 = sbr.rel (%p103) target = $region16
        $region15: #{tpu_custom_call.1} parent=11 // pred_region
          %s107 = ssub.s32 6144, 6144
          %108 = vsyncadd [#allocation6], %s107
          %s109 = sshll.u32 [#allocation5], 4
          %s110 = int_to_ptr.vmem [resolvable:$true] %s109
          %115 = dma.hbm_to_vmem [thread:$0]  %s1, 6144, %s110, [#allocation6], 384, 384, 24
        $region16: #{tpu_custom_call.1} parent=11 // pred_fallthru
          _
      $region12: #{tpu_custom_call.1} parent=5 // pred_fallthru
        _
      %p116 = scmp.lt.s32.totalorder %s15, 2
      // Predicated region
      $region17: #{tpu_custom_call.1} parent=5 // pred_check
        %p117 = pneg %p116
      $region18: #{tpu_custom_call.1} parent=5 // pred_check_branch
        %119 = sbr.rel (%p117) target = $region20
      $region19: #{tpu_custom_call.1} parent=5 // pred_region
        // Predicated region
        $region21: #{tpu_custom_call.1} parent=19 // pred_check
          %p120 = pneg %p35
        $region22: #{tpu_custom_call.1} parent=19 // pred_check_branch
          %122 = sbr.rel (%p120) target = $region24
        $region23: #{tpu_custom_call.1} parent=19 // pred_region
          %s123 = sand.u32 %s25, 1
          %s124 = scalar_lea.sflag [#allocation3], %s123
          %s125 = sand.u32 %s25, 1
          %s126 = smul.addr %s125, 64
          %s127 = scalar_lea.vmem [#allocation2], %s126
          %s128 = smul.u32 8, %s15
          %s130 = ssub.s32 1024, 1024
          %131 = vsyncadd %s124, %s130
          %s132 = smul.addr %s128, 128
          %s133 = scalar_lea.hbm %s0, %s132
          %s134 = sshll.u32 %s127, 4
          %s135 = int_to_ptr.vmem [resolvable:$true] %s134
          %140 = dma.hbm_to_vmem [thread:$0]  %s133, 1024, %s135, %s124, 128, 128, 8
        $region24: #{tpu_custom_call.1} parent=19 // pred_fallthru
          _
      $region20: #{tpu_custom_call.1} parent=5 // pred_fallthru
        _
      %p141 = scmp.le.s32.totalorder 1, %s15
      %p142 = scmp.lt.s32.totalorder %s15, 3
      %p143 = pnand %p141, %p142
      %p144 = pneg %p143
      // Predicated region
      $region25: #{tpu_custom_call.1} parent=5 // pred_check
        _
      $region26: #{tpu_custom_call.1} parent=5 // pred_check_branch
        %146 = sbr.rel (%p143) target = $region28
      $region27: #{tpu_custom_call.1} parent=5 // pred_region
        %s147 = ssub.s32 %s15, 1
        %s148 = sand.u32 %s28, 1
        %s149 = scalar_lea.sflag [#allocation3], %s148
        %s150 = sand.u32 %s28, 1
        %s151 = smul.addr %s150, 64
        %s152 = scalar_lea.vmem [#allocation2], %s151
        // Predicated region
        $region29: #{tpu_custom_call.1} parent=27 // pred_check
          %p153 = pneg %p41
        $region30: #{tpu_custom_call.1} parent=27 // pred_check_branch
          %155 = sbr.rel (%p153) target = $region32
        $region31: #{tpu_custom_call.1} parent=27 // pred_region
          %156 = dma.done %s149, 1024
        $region32: #{tpu_custom_call.1} parent=27 // pred_fallthru
          _
        // Predicated region
        $region33: #{tpu_custom_call.1} parent=27 // pred_check
          %p157 = pneg %p62
        $region34: #{tpu_custom_call.1} parent=27 // pred_check_branch
          %159 = sbr.rel (%p157) target = $region36
        $region35: #{tpu_custom_call.1} parent=27 // pred_region
          %160 = dma.done [#allocation6], 6144
        $region36: #{tpu_custom_call.1} parent=27 // pred_fallthru
          _
        %s161 = sand.u32 %s28, 1
        %s162 = scalar_lea.sflag [#allocation3], %s161
        %s163 = sand.u32 %s28, 1
        %s164 = smul.addr %s163, 64
        %s165 = scalar_lea.vmem [#allocation2], %s164
        %p166 = pneg %p41
        %p167 = pneg %p38
        %p168 = pneg %p62
        %p169 = pneg %p59
        %p170 = pneg %p88
        %p171 = pneg %p85
        %s172 = sand.u32 %s75, 1
        %s173 = scalar_lea.sflag [#allocation4], %s172
        %s174 = sand.u32 %s75, 1
        %s175 = smul.addr %s174, 192
        %s176 = scalar_lea.vmem [#allocation7], %s175
        %s177 = smul.u32 8, %s20
        %s178 = smul.u32 8, %s20
        %v179 = vld [vmem:[%s152] sm:$0xff]
        %v180 = vld [vmem:[%s152 + $0x8] sm:$0xff]
        %v181 = vld [vmem:[%s152 + $0x10] sm:$0xff]
        %v182 = vld [vmem:[%s152 + $0x18] sm:$0xff]
        %v183 = vld [vmem:[%s152 + $0x20] sm:$0xff]
        %v184 = vld [vmem:[%s152 + $0x28] sm:$0xff]
        %v185 = vld [vmem:[%s152 + $0x30] sm:$0xff]
        %v186 = vld [vmem:[%s152 + $0x38] sm:$0xff]
        %v187 = vld [vmem:[#allocation5] sm:$0xff]
        %v188 = vld [vmem:[#allocation5 + $0x8] sm:$0xff]
        %v189 = vld [vmem:[#allocation5 + $0x10] sm:$0xff]
        %v190 = vld [vmem:[#allocation5 + $0x18] sm:$0xff]
        %v191 = vld [vmem:[#allocation5 + $0x20] sm:$0xff]
        %v192 = vld [vmem:[#allocation5 + $0x28] sm:$0xff]
        %v193 = vld [vmem:[#allocation5 + $0x30] sm:$0xff]
        %v194 = vld [vmem:[#allocation5 + $0x38] sm:$0xff]
        %v195 = vld [vmem:[#allocation5 + $0x40] sm:$0xff]
        %v196 = vld [vmem:[#allocation5 + $0x48] sm:$0xff]
        %v197 = vld [vmem:[#allocation5 + $0x50] sm:$0xff]
        %v198 = vld [vmem:[#allocation5 + $0x58] sm:$0xff]
        %v199 = vld [vmem:[#allocation5 + $0x60] sm:$0xff]
        %v200 = vld [vmem:[#allocation5 + $0x68] sm:$0xff]
        %v201 = vld [vmem:[#allocation5 + $0x70] sm:$0xff]
        %v202 = vld [vmem:[#allocation5 + $0x78] sm:$0xff]
        %v203 = vld [vmem:[#allocation5 + $0x80] sm:$0xff]
        %v204 = vld [vmem:[#allocation5 + $0x88] sm:$0xff]
        %v205 = vld [vmem:[#allocation5 + $0x90] sm:$0xff]
        %v206 = vld [vmem:[#allocation5 + $0x98] sm:$0xff]
        %v207 = vld [vmem:[#allocation5 + $0xa0] sm:$0xff]
        %v208 = vld [vmem:[#allocation5 + $0xa8] sm:$0xff]
        %v209 = vld [vmem:[#allocation5 + $0xb0] sm:$0xff]
        %v210 = vld [vmem:[#allocation5 + $0xb8] sm:$0xff]
        %v211 = vld [vmem:[#allocation5 + $0xc0] sm:$0xff]
        %v212 = vld [vmem:[#allocation5 + $0xc8] sm:$0xff]
        %v213 = vld [vmem:[#allocation5 + $0xd0] sm:$0xff]
        %v214 = vld [vmem:[#allocation5 + $0xd8] sm:$0xff]
        %v215 = vld [vmem:[#allocation5 + $0xe0] sm:$0xff]
        %v216 = vld [vmem:[#allocation5 + $0xe8] sm:$0xff]
        %v217 = vld [vmem:[#allocation5 + $0xf0] sm:$0xff]
        %v218 = vld [vmem:[#allocation5 + $0xf8] sm:$0xff]
        %v219 = vld [vmem:[#allocation5 + $0x100] sm:$0xff]
        %v220 = vld [vmem:[#allocation5 + $0x108] sm:$0xff]
        %v221 = vld [vmem:[#allocation5 + $0x110] sm:$0xff]
        %v222 = vld [vmem:[#allocation5 + $0x118] sm:$0xff]
        %v223 = vld [vmem:[#allocation5 + $0x120] sm:$0xff]
        %v224 = vld [vmem:[#allocation5 + $0x128] sm:$0xff]
        %v225 = vld [vmem:[#allocation5 + $0x130] sm:$0xff]
        %v226 = vld [vmem:[#allocation5 + $0x138] sm:$0xff]
        %v227 = vld [vmem:[#allocation5 + $0x140] sm:$0xff]
        %v228 = vld [vmem:[#allocation5 + $0x148] sm:$0xff]
        %v229 = vld [vmem:[#allocation5 + $0x150] sm:$0xff]
        %v230 = vld [vmem:[#allocation5 + $0x158] sm:$0xff]
        %v231 = vld [vmem:[#allocation5 + $0x160] sm:$0xff]
        %v232 = vld [vmem:[#allocation5 + $0x168] sm:$0xff]
        %v233 = vld [vmem:[#allocation5 + $0x170] sm:$0xff]
        %v234 = vld [vmem:[#allocation5 + $0x178] sm:$0xff]
        %235 = vmatprep.subr.mxu0 %v188
        %236 = vmatpush1.msra.mxu0 %v187
        %237 = vmatprep.subr.mxu0 %v191
        %238 = vmatpush1.msra.mxu0 %v190
        %239 = vmatprep.subr.mxu0 %v194
        %240 = vmatpush1.msra.mxu0 %v193
        %241 = vmatprep.subr.mxu0 %v197
        %242 = vmatpush1.msra.mxu0 %v196
        %243 = vmatprep.subr.mxu0 %v200
        %244 = vmatpush1.msra.mxu0 %v199
        %245 = vmatprep.subr.mxu0 %v203
        %246 = vmatpush1.msra.mxu0 %v202
        %247 = vmatprep.subr.mxu0 %v206
        %248 = vmatpush1.msra.mxu0 %v205
        %249 = vmatprep.subr.mxu0 %v209
        %250 = vmatpush1.msra.mxu0 %v208
        %251 = vmatprep.subr.mxu0 %v212
        %252 = vmatpush1.msra.mxu0 %v211
        %253 = vmatprep.subr.mxu0 %v215
        %254 = vmatpush1.msra.mxu0 %v214
        %255 = vmatprep.subr.mxu0 %v218
        %256 = vmatpush1.msra.mxu0 %v217
        %257 = vmatprep.subr.mxu0 %v221
        %258 = vmatpush1.msra.mxu0 %v220
        %259 = vmatprep.subr.mxu0 %v224
        %260 = vmatpush1.msra.mxu0 %v223
        %261 = vmatprep.subr.mxu0 %v227
        %262 = vmatpush1.msra.mxu0 %v226
        %263 = vmatprep.subr.mxu0 %v230
        %264 = vmatpush1.msra.mxu0 %v229
        %265 = vmatprep.subr.mxu0 %v233
        %266 = vmatpush1.msra.mxu0 %v232
        %267 = vmatprep.subr.mxu0 0.0
        %268 = vmatpush1.msra.mxu0 0.0
        %269 = vmatprep.subr.mxu0 0.0
        %270 = vmatpush1.msra.mxu0 0.0
        %271 = vmatprep.subr.mxu0 0.0
        %272 = vmatpush1.msra.mxu0 0.0
        %273 = vmatprep.subr.mxu0 0.0
        %274 = vmatpush1.msra.mxu0 0.0
        %275 = vmatprep.subr.mxu0 0.0
        %276 = vmatpush1.msra.mxu0 0.0
        %277 = vmatprep.subr.mxu0 0.0
        %278 = vmatpush1.msra.mxu0 0.0
        %279 = vmatprep.subr.mxu0 0.0
        %280 = vmatpush1.msra.mxu0 0.0
        %281 = vmatprep.subr.mxu0 0.0
        %282 = vmatpush1.msra.mxu0 0.0
        %283 = vmatprep.subr.mxu0 0.0
        %284 = vmatpush1.msra.mxu0 0.0
        %285 = vmatprep.subr.mxu0 0.0
        %286 = vmatpush1.msra.mxu0 0.0
        %287 = vmatprep.subr.mxu0 0.0
        %288 = vmatpush1.msra.mxu0 0.0
        %289 = vmatprep.subr.mxu0 0.0
        %290 = vmatpush1.msra.mxu0 0.0
        %291 = vmatprep.subr.mxu0 0.0
        %292 = vmatpush1.msra.mxu0 0.0
        %293 = vmatprep.subr.mxu0 0.0
        %294 = vmatpush1.msra.mxu0 0.0
        %295 = vmatprep.subr.mxu0 0.0
        %296 = vmatpush1.msra.mxu0 0.0
        %297 = vmatprep.subr.mxu0 0.0
        %298 = vmatpush1.msra.mxu0 0.0
        %299 = vmatprep.mubr.f32.mxu0 0.0
        %300 = vmatmul.mubr.f32.gmra.mrb[0].mxu0 %v179
        %v301 = vpop.f32.mrb[0].mxu0
        %v302 = vadd.f32 0.0, %v301
        %v303 = vpop.f32.mrb[0].mxu0
        %v304 = vadd.f32 0.0, %v303
        %305 = vmatprep.mubr.f32.mxu0 0.0
        %306 = vmatmul.mubr.f32.gmra.mrb[0].mxu0 %v180
        %v307 = vpop.f32.mrb[0].mxu0
        %v308 = vadd.f32 0.0, %v307
        %v309 = vpop.f32.mrb[0].mxu0
        %v310 = vadd.f32 0.0, %v309
        %311 = vmatprep.mubr.f32.mxu0 0.0
        %312 = vmatmul.mubr.f32.gmra.mrb[0].mxu0 %v181
        %v313 = vpop.f32.mrb[0].mxu0
        %v314 = vadd.f32 0.0, %v313
        %v315 = vpop.f32.mrb[0].mxu0
        %v316 = vadd.f32 0.0, %v315
        %317 = vmatprep.mubr.f32.mxu0 0.0
        %318 = vmatmul.mubr.f32.gmra.mrb[0].mxu0 %v182
        %v319 = vpop.f32.mrb[0].mxu0
        %v320 = vadd.f32 0.0, %v319
        %v321 = vpop.f32.mrb[0].mxu0
        %v322 = vadd.f32 0.0, %v321
        %323 = vmatprep.mubr.f32.mxu0 0.0
        %324 = vmatmul.mubr.f32.gmra.mrb[0].mxu0 %v183
        %v325 = vpop.f32.mrb[0].mxu0
        %v326 = vadd.f32 0.0, %v325
        %v327 = vpop.f32.mrb[0].mxu0
        %v328 = vadd.f32 0.0, %v327
        %329 = vmatprep.mubr.f32.mxu0 0.0
        %330 = vmatmul.mubr.f32.gmra.mrb[0].mxu0 %v184
        %v331 = vpop.f32.mrb[0].mxu0
        %v332 = vadd.f32 0.0, %v331
        %v333 = vpop.f32.mrb[0].mxu0
        %v334 = vadd.f32 0.0, %v333
        %335 = vmatprep.mubr.f32.mxu0 0.0
        %336 = vmatmul.mubr.f32.gmra.mrb[0].mxu0 %v185
        %v337 = vpop.f32.mrb[0].mxu0
        %v338 = vadd.f32 0.0, %v337
        %v339 = vpop.f32.mrb[0].mxu0
        %v340 = vadd.f32 0.0, %v339
        %341 = vmatprep.mubr.f32.mxu0 0.0
        %342 = vmatmul.mubr.f32.gmra.mrb[0].mxu0 %v186
        %v343 = vpop.f32.mrb[0].mxu0
        %v344 = vadd.f32 0.0, %v343
        %v345 = vpop.f32.mrb[0].mxu0
        %v346 = vadd.f32 0.0, %v345
        %347 = vdwg.mxu0
        %348 = vmatprep.subr.mxu0 0.0
        %349 = vmatpush1.msra.mxu0 %v189
        %350 = vmatprep.subr.mxu0 0.0
        %351 = vmatpush1.msra.mxu0 %v192
        %352 = vmatprep.subr.mxu0 0.0
        %353 = vmatpush1.msra.mxu0 %v195
        %354 = vmatprep.subr.mxu0 0.0
        %355 = vmatpush1.msra.mxu0 %v198
        %356 = vmatprep.subr.mxu0 0.0
        %357 = vmatpush1.msra.mxu0 %v201
        %358 = vmatprep.subr.mxu0 0.0
        %359 = vmatpush1.msra.mxu0 %v204
        %360 = vmatprep.subr.mxu0 0.0
        %361 = vmatpush1.msra.mxu0 %v207
        %362 = vmatprep.subr.mxu0 0.0
        %363 = vmatpush1.msra.mxu0 %v210
        %364 = vmatprep.subr.mxu0 0.0
        %365 = vmatpush1.msra.mxu0 %v213
        %366 = vmatprep.subr.mxu0 0.0
        %367 = vmatpush1.msra.mxu0 %v216
        %368 = vmatprep.subr.mxu0 0.0
        %369 = vmatpush1.msra.mxu0 %v219
        %370 = vmatprep.subr.mxu0 0.0
        %371 = vmatpush1.msra.mxu0 %v222
        %372 = vmatprep.subr.mxu0 0.0
        %373 = vmatpush1.msra.mxu0 %v225
        %374 = vmatprep.subr.mxu0 0.0
        %375 = vmatpush1.msra.mxu0 %v228
        %376 = vmatprep.subr.mxu0 0.0
        %377 = vmatpush1.msra.mxu0 %v231
        %378 = vmatprep.subr.mxu0 0.0
        %379 = vmatpush1.msra.mxu0 %v234
        %380 = vmatprep.subr.mxu0 0.0
        %381 = vmatpush1.msra.mxu0 0.0
        %382 = vmatprep.subr.mxu0 0.0
        %383 = vmatpush1.msra.mxu0 0.0
        %384 = vmatprep.subr.mxu0 0.0
        %385 = vmatpush1.msra.mxu0 0.0
        %386 = vmatprep.subr.mxu0 0.0
        %387 = vmatpush1.msra.mxu0 0.0
        %388 = vmatprep.subr.mxu0 0.0
        %389 = vmatpush1.msra.mxu0 0.0
        %390 = vmatprep.subr.mxu0 0.0
        %391 = vmatpush1.msra.mxu0 0.0
        %392 = vmatprep.subr.mxu0 0.0
        %393 = vmatpush1.msra.mxu0 0.0
        %394 = vmatprep.subr.mxu0 0.0
        %395 = vmatpush1.msra.mxu0 0.0
        %396 = vmatprep.subr.mxu0 0.0
        %397 = vmatpush1.msra.mxu0 0.0
        %398 = vmatprep.subr.mxu0 0.0
        %399 = vmatpush1.msra.mxu0 0.0
        %400 = vmatprep.subr.mxu0 0.0
        %401 = vmatpush1.msra.mxu0 0.0
        %402 = vmatprep.subr.mxu0 0.0
        %403 = vmatpush1.msra.mxu0 0.0
        %404 = vmatprep.subr.mxu0 0.0
        %405 = vmatpush1.msra.mxu0 0.0
        %406 = vmatprep.subr.mxu0 0.0
        %407 = vmatpush1.msra.mxu0 0.0
        %408 = vmatprep.subr.mxu0 0.0
        %409 = vmatpush1.msra.mxu0 0.0
        %410 = vmatprep.subr.mxu0 0.0
        %411 = vmatpush1.msra.mxu0 0.0
        %412 = vmatprep.mubr.f32.mxu0 0.0
        %413 = vmatmul.mubr.f32.gmra.mrb[0].mxu0 %v179
        %v414 = vpop.f32.mrb[0].mxu0
        %v415 = vadd.f32 0.0, %v414
        %v416 = vpop.f32.mrb[0].mxu0
        %417 = vmatprep.mubr.f32.mxu0 0.0
        %418 = vmatmul.mubr.f32.gmra.mrb[0].mxu0 %v180
        %v419 = vpop.f32.mrb[0].mxu0
        %v420 = vadd.f32 0.0, %v419
        %v421 = vpop.f32.mrb[0].mxu0
        %422 = vmatprep.mubr.f32.mxu0 0.0
        %423 = vmatmul.mubr.f32.gmra.mrb[0].mxu0 %v181
        %v424 = vpop.f32.mrb[0].mxu0
        %v425 = vadd.f32 0.0, %v424
        %v426 = vpop.f32.mrb[0].mxu0
        %427 = vmatprep.mubr.f32.mxu0 0.0
        %428 = vmatmul.mubr.f32.gmra.mrb[0].mxu0 %v182
        %v429 = vpop.f32.mrb[0].mxu0
        %v430 = vadd.f32 0.0, %v429
        %v431 = vpop.f32.mrb[0].mxu0
        %432 = vmatprep.mubr.f32.mxu0 0.0
        %433 = vmatmul.mubr.f32.gmra.mrb[0].mxu0 %v183
        %v434 = vpop.f32.mrb[0].mxu0
        %v435 = vadd.f32 0.0, %v434
        %v436 = vpop.f32.mrb[0].mxu0
        %437 = vmatprep.mubr.f32.mxu0 0.0
        %438 = vmatmul.mubr.f32.gmra.mrb[0].mxu0 %v184
        %v439 = vpop.f32.mrb[0].mxu0
        %v440 = vadd.f32 0.0, %v439
        %v441 = vpop.f32.mrb[0].mxu0
        %442 = vmatprep.mubr.f32.mxu0 0.0
        %443 = vmatmul.mubr.f32.gmra.mrb[0].mxu0 %v185
        %v444 = vpop.f32.mrb[0].mxu0
        %v445 = vadd.f32 0.0, %v444
        %v446 = vpop.f32.mrb[0].mxu0
        %447 = vmatprep.mubr.f32.mxu0 0.0
        %448 = vmatmul.mubr.f32.gmra.mrb[0].mxu0 %v186
        %v449 = vpop.f32.mrb[0].mxu0
        %v450 = vadd.f32 0.0, %v449
        %v451 = vpop.f32.mrb[0].mxu0
        %452 = vdwg.mxu0
        %453 = vst [vmem:[%s176] sm:$0xff] %v302
        %454 = vst [vmem:[%s176 + $0x8] sm:$0xff] %v304
        %455 = vst [vmem:[%s176 + $0x10] sm:$0xff] %v415
        %456 = vst [vmem:[%s176 + $0x18] sm:$0xff] %v308
        %457 = vst [vmem:[%s176 + $0x20] sm:$0xff] %v310
        %458 = vst [vmem:[%s176 + $0x28] sm:$0xff] %v420
        %459 = vst [vmem:[%s176 + $0x30] sm:$0xff] %v314
        %460 = vst [vmem:[%s176 + $0x38] sm:$0xff] %v316
        %461 = vst [vmem:[%s176 + $0x40] sm:$0xff] %v425
        %462 = vst [vmem:[%s176 + $0x48] sm:$0xff] %v320
        %463 = vst [vmem:[%s176 + $0x50] sm:$0xff] %v322
        %464 = vst [vmem:[%s176 + $0x58] sm:$0xff] %v430
        %465 = vst [vmem:[%s176 + $0x60] sm:$0xff] %v326
        %466 = vst [vmem:[%s176 + $0x68] sm:$0xff] %v328
        %467 = vst [vmem:[%s176 + $0x70] sm:$0xff] %v435
        %468 = vst [vmem:[%s176 + $0x78] sm:$0xff] %v332
        %469 = vst [vmem:[%s176 + $0x80] sm:$0xff] %v334
        %470 = vst [vmem:[%s176 + $0x88] sm:$0xff] %v440
        %471 = vst [vmem:[%s176 + $0x90] sm:$0xff] %v338
        %472 = vst [vmem:[%s176 + $0x98] sm:$0xff] %v340
        %473 = vst [vmem:[%s176 + $0xa0] sm:$0xff] %v445
        %474 = vst [vmem:[%s176 + $0xa8] sm:$0xff] %v344
        %475 = vst [vmem:[%s176 + $0xb0] sm:$0xff] %v346
        %476 = vst [vmem:[%s176 + $0xb8] sm:$0xff] %v450
        %s477 = sand.u32 %s75, 1
        %s478 = scalar_lea.sflag [#allocation4], %s477
        %s479 = sand.u32 %s75, 1
        %s480 = smul.addr %s479, 192
        %s481 = scalar_lea.vmem [#allocation7], %s480
        // Predicated region
        $region37: #{tpu_custom_call.1} parent=27 // pred_check
          %p482 = pneg %p85
        $region38: #{tpu_custom_call.1} parent=27 // pred_check_branch
          %484 = sbr.rel (%p482) target = $region40
        $region39: #{tpu_custom_call.1} parent=27 // pred_region
          %s485 = smul.u32 8, %s20
          %s487 = ssub.s32 3072, 3072
          %488 = vsyncadd %s478, %s487
          %s489 = smul.addr %s485, 3
          %s490 = smul.addr %s489, 128
          %s491 = scalar_lea.hbm %s2, %s490
          %s492 = sshll.u32 %s481, 4
          %s493 = int_to_ptr.vmem [resolvable:$true] %s492
          %498 = dma.vmem_to_hbm [thread:$0]  %s493, 3072, %s491, %s478, 384, 384, 24
        $region40: #{tpu_custom_call.1} parent=27 // pred_fallthru
          _
      $region28: #{tpu_custom_call.1} parent=5 // pred_fallthru
        _
      %p499 = scmp.le.s32.totalorder 2, %s15
      // Predicated region
      $region41: #{tpu_custom_call.1} parent=5 // pred_check
        %p500 = pneg %p499
      $region42: #{tpu_custom_call.1} parent=5 // pred_check_branch
        %502 = sbr.rel (%p500) target = $region44
      $region43: #{tpu_custom_call.1} parent=5 // pred_region
        %s503 = ssub.s32 %s15, 2
        // Predicated region
        $region45: #{tpu_custom_call.1} parent=43 // pred_check
          %p504 = pneg %p91
        $region46: #{tpu_custom_call.1} parent=43 // pred_check_branch
          %506 = sbr.rel (%p504) target = $region48
        $region47: #{tpu_custom_call.1} parent=43 // pred_region
          %s507 = sand.u32 %s76, 1
          %s508 = scalar_lea.sflag [#allocation4], %s507
          %s509 = sand.u32 %s76, 1
          %s510 = smul.addr %s509, 192
          %s511 = scalar_lea.vmem [#allocation7], %s510
          %512 = dma.done %s508, 3072
        $region48: #{tpu_custom_call.1} parent=43 // pred_fallthru
          _
      $region44: #{tpu_custom_call.1} parent=5 // pred_fallthru
        _
    $region6: #{tpu_custom_call.1} parent=1 // loop_footer
      %s19 = sadd.s32 1, %s15
    $region7: #{tpu_custom_call.1} parent=1 // loop_footer_branch
      %14 = sbr.rel target = $region3
    $region8: #{tpu_custom_call.1} parent=1 // loop_exit
      _
    %513 = vsyncpa [#allocation3], 1
    %s514 = scalar_lea.sflag [#allocation3], 1
    %515 = vsyncpa %s514, 1
    %516 = vsyncpa [#allocation6], 1
    %517 = vsyncpa [#allocation4], 1
    %s518 = scalar_lea.sflag [#allocation4], 1
    %519 = vsyncpa %s518, 1

</llo_original>
